<compile_context>
chip_gen: v6e
topology: v6e:2x2x1
jax: 0.10.0
libtpu: 0.0.40
codegen_flags: <defaults>
</compile_context>

<pallas_src>
import math

import jax
import jax.numpy as jnp
from jax import lax
from jax.experimental import pallas as pl
from jax.experimental.pallas import tpu as pltpu


# --------------------------------------------------------------------------
# Equation parsing (mirrors normalize_subscript: implicit '->', binary check)
# --------------------------------------------------------------------------
def _normalize_subscript(equation):
    eq = equation.replace(" ", "")
    if "." in eq:
        # TODO(synk): ellipsis ('...') broadcasting is not implemented.
        raise NotImplementedError("ellipsis subscripts are not supported")
    is_binary = "," in eq
    if "->" in eq:
        lhs, out = eq.split("->")
    else:
        lhs = eq
        flat = lhs.replace(",", "")
        out = "".join(sorted(c for c in set(flat) if flat.count(c) == 1))
    return lhs.split(","), out, is_binary


def _collapse_diagonals(x, s):
    """Repeated subscripts within a single operand -> take the diagonal."""
    while True:
        seen, dup = {}, None
        for i, c in enumerate(s):
            if c in seen:
                dup = (seen[c], i, c)
                break
            seen[c] = i
        if dup is None:
            return x, s
        i, j, c = dup
        x = jnp.diagonal(x, axis1=i, axis2=j)  # diagonal axis appended last
        s = "".join(ch for t, ch in enumerate(s) if t not in (i, j)) + c


# --------------------------------------------------------------------------
# Tile selection / padding helpers
# --------------------------------------------------------------------------
def _round_up(x, m):
    return ((x + m - 1) // m) * m


def _vmem_capacity_bytes():
    try:
        cap = getattr(pltpu.get_tpu_info(), "vmem_capacity_bytes", None)
        if cap:
            return int(cap)
    except Exception:
        pass
    return 64 * 1024 * 1024  # conservative: v7x per-TensorCore VMEM


def _select_tiles(B, M, K, N, in_bytes, out_bytes, budget):
    m_r = _round_up(max(M, 1), 8)
    k_r = _round_up(max(K, 1), 128)
    n_r = _round_up(max(N, 1), 128)
    tm = m_r if m_r <= 256 else 256          # MXU-sized free dims
    tn = n_r if n_r <= 256 else 256
    tk = k_r if k_r <= 512 else 512

    def footprint(tb_, tm_, tn_, tk_):
        a_b = tb_ * tm_ * tk_ * in_bytes
        b_b = tb_ * tk_ * tn_ * in_bytes
        o_b = tb_ * tm_ * tn_ * out_bytes
        acc = tb_ * tm_ * tn_ * 4
        return 2 * (a_b + b_b + o_b) + acc   # double-buffered I/O + scratch

    # Raise arithmetic intensity: bigger output tile first, then longer K.
    while 2 * tn <= n_r and tn < 512 and footprint(1, tm, 2 * tn, tk) <= budget:
        tn *= 2
    while 2 * tm <= m_r and tm < 512 and footprint(1, 2 * tm, tn, tk) <= budget:
        tm *= 2
    while 2 * tk <= k_r and tk < 2048 and footprint(1, tm, tn, 2 * tk) <= budget:
        tk *= 2

    # Block several batches per grid step when per-batch matrices are tiny,
    # amortizing the ~0.35us per-grid-step pipeline overhead.
    tb = 1
    while (tb < B and tb * tm * tn * tk < 256 * 256 * 1024
           and footprint(2 * tb, tm, tn, tk) <= budget):
        tb *= 2
    tb = min(tb, max(B, 1))
    return tb, tm, tn, tk


def _pad_to(x, shape):
    pads = [(0, t - s) for s, t in zip(x.shape, shape)]
    if any(p[1] for p in pads):
        x = jnp.pad(x, pads)
    return x


# --------------------------------------------------------------------------
# Pallas tiled batched matmul:  (B,M,K) x (B,K,N) [or (B,N,K)] -> (B,M,N)
# --------------------------------------------------------------------------
def _pallas_bmm(a, b, *, trans_b):
    B, M, K = a.shape
    N = b.shape[1] if trans_b else b.shape[2]

    out_dtype = jnp.result_type(a.dtype, b.dtype)
    # MXU operands must share a dtype; promote the narrower operand.
    if a.dtype != out_dtype:
        a = a.astype(out_dtype)
    if b.dtype != out_dtype:
        b = b.astype(out_dtype)
    # TODO(synk): integer operands would need dequant/requant on v7x (bf16/fp8 MXU only).
    acc_dtype = jnp.float32 if jnp.issubdtype(out_dtype, jnp.inexact) else jnp.int32
    in_bytes = jnp.dtype(out_dtype).itemsize
    out_bytes = jnp.dtype(out_dtype).itemsize

    vmem_cap = _vmem_capacity_bytes()
    vmem_limit = min(int(vmem_cap * 0.75), 112 * 1024 * 1024)
    tile_budget = min(int(vmem_cap * 0.4), 48 * 1024 * 1024)

    tb, tm, tn, tk = _select_tiles(B, M, K, N, in_bytes, out_bytes, tile_budget)

    Bp = _round_up(B, tb)
    Mp = _round_up(M, tm)
    Kp = _round_up(K, tk)
    Np = _round_up(N, tn)
    a = _pad_to(a, (Bp, Mp, Kp))
    b = _pad_to(b, (Bp, Np, Kp) if trans_b else (Bp, Kp, Np))

    nb, nm, nn, nk = Bp // tb, Mp // tm, Np // tn, Kp // tk

    contract = ((((2,), (2,)), ((0,), (0,))) if trans_b
                else (((2,), (1,)), ((0,), (0,))))

    flops = 2 * Bp * Mp * Np * Kp
    bytes_accessed = (Bp * Mp * Kp * in_bytes * nn
                      + Bp * Kp * Np * in_bytes * nm
                      + Bp * Mp * Np * out_bytes)
    cost = pl.CostEstimate(flops=flops, transcendentals=0,
                           bytes_accessed=bytes_accessed)

    if nk == 1:
        # Whole contraction fits in one K tile: no scratch accumulator, no
        # K grid axis, single lane-dense store per output block.
        def kernel(a_ref, b_ref, o_ref):
            o_ref[...] = lax.dot_general(
                a_ref[...], b_ref[...], contract,
                preferred_element_type=acc_dtype).astype(o_ref.dtype)

        if trans_b:
            b_spec = pl.BlockSpec((tb, tn, tk), lambda bi, mi, ni: (bi, ni, 0))
        else:
            b_spec = pl.BlockSpec((tb, tk, tn), lambda bi, mi, ni: (0, 0, ni)
                                  if False else (bi, 0, ni))

        out = pl.pallas_call(
            kernel,
            out_shape=jax.ShapeDtypeStruct((Bp, Mp, Np), out_dtype),
            grid_spec=pltpu.PrefetchScalarGridSpec(
                num_scalar_prefetch=0,
                grid=(nb, nm, nn),
                in_specs=[
                    pl.BlockSpec((tb, tm, tk), lambda bi, mi, ni: (bi, mi, 0)),
                    b_spec,
                ],
                out_specs=pl.BlockSpec((tb, tm, tn),
                                       lambda bi, mi, ni: (bi, mi, ni)),
            ),
            compiler_params=pltpu.CompilerParams(
                dimension_semantics=("parallel", "parallel", "parallel"),
                vmem_limit_bytes=vmem_limit,
            ),
            cost_estimate=cost,
        )(a, b)
    else:
        def kernel(a_ref, b_ref, o_ref, acc_ref):
            @pl.when(pl.program_id(3) == 0)
            def _():
                acc_ref[...] = jnp.zeros_like(acc_ref)

            acc_ref[...] += lax.dot_general(
                a_ref[...], b_ref[...], contract,
                preferred_element_type=acc_dtype)

            @pl.when(pl.program_id(3) == pl.num_programs(3) - 1)
            def _():
                o_ref[...] = acc_ref[...].astype(o_ref.dtype)

        if trans_b:
            b_spec = pl.BlockSpec((tb, tn, tk),
                                  lambda bi, mi, ni, ki: (bi, ni, ki))
        else:
            b_spec = pl.BlockSpec((tb, tk, tn),
                                  lambda bi, mi, ni, ki: (bi, ki, ni))

        out = pl.pallas_call(
            kernel,
            out_shape=jax.ShapeDtypeStruct((Bp, Mp, Np), out_dtype),
            grid_spec=pltpu.PrefetchScalarGridSpec(
                num_scalar_prefetch=0,
                grid=(nb, nm, nn, nk),
                in_specs=[
                    pl.BlockSpec((tb, tm, tk),
                                 lambda bi, mi, ni, ki: (bi, mi, ki)),
                    b_spec,
                ],
                out_specs=pl.BlockSpec((tb, tm, tn),
                                       lambda bi, mi, ni, ki: (bi, mi, ni)),
                scratch_shapes=[pltpu.VMEM((tb, tm, tn), acc_dtype)],
            ),
            compiler_params=pltpu.CompilerParams(
                dimension_semantics=("parallel", "parallel", "parallel",
                                     "arbitrary"),
                vmem_limit_bytes=vmem_limit,
            ),
            cost_estimate=cost,
        )(a, b)

    if (Bp, Mp, Np) != (B, M, N):
        out = out[:B, :M, :N]
    return out


# --------------------------------------------------------------------------
# General binary einsum on top of the Pallas batched matmul
# --------------------------------------------------------------------------
def einsum2(equation, x0, x1):
    subs, out, is_binary = _normalize_subscript(equation)
    if not is_binary:
        raise RuntimeError("The subscript indicates one input, but two were passed")
    s0, s1 = subs
    x0 = jnp.asarray(x0)
    x1 = jnp.asarray(x1)

    x0, s0 = _collapse_diagonals(x0, s0)
    x1, s1 = _collapse_diagonals(x1, s1)

    # Pre-sum axes that appear in only one operand and not in the output.
    def presum(x, s, other, out_s):
        drop = tuple(i for i, c in enumerate(s) if c not in other and c not in out_s)
        if drop:
            x = jnp.sum(x, axis=drop)
            s = "".join(c for i, c in enumerate(s) if i not in drop)
        return x, s

    x0, s0 = presum(x0, s0, s1, out)
    x1, s1 = presum(x1, s1, s0, out)

    batch = [c for c in s0 if c in s1 and c in out]
    m = [c for c in s0 if c not in s1 and c in out]
    n = [c for c in s1 if c not in s0 and c in out]
    k = [c for c in s0 if c in s1 and c not in out]

    dims = {}
    for s, x in ((s0, x0), (s1, x1)):
        for c, d in zip(s, x.shape):
            dims[c] = d

    Msz = math.prod([dims[c] for c in m]) if m else 1
    Nsz = math.prod([dims[c] for c in n]) if n else 1

    # Put the larger free-axis group on the output's minor (lane) dimension so
    # the kernel's stores are lane-dense with minimal padding.
    if Nsz < 128 <= Msz:
        x0, s0, x1, s1 = x1, s1, x0, s0
        m, n = n, m
        Msz, Nsz = Nsz, Msz

    Bsz = math.prod([dims[c] for c in batch]) if batch else 1
    Ksz = math.prod([dims[c] for c in k]) if k else 1

    def perm_for(s, order):
        return [s.index(c) for c in order]

    # LHS laid out batch + m + k (contraction minor == MXU-native LHS).
    p0 = perm_for(s0, batch + m + k)
    a = jnp.transpose(x0, p0).reshape(Bsz, Msz, Ksz)

    # RHS: pick the layout ((B,N,K) "trans_b" vs (B,K,N)) that avoids a real
    # transpose; if one is unavoidable prefer contract-last (MXU-native RHS).
    perm_nk = perm_for(s1, batch + n + k)
    perm_kn = perm_for(s1, batch + k + n)
    if perm_nk == sorted(perm_nk):
        trans_b = True
    elif perm_kn == sorted(perm_kn):
        trans_b = False
    else:
        trans_b = bool(s1) and (s1[-1] in k)
    x1p = jnp.transpose(x1, perm_nk if trans_b else perm_kn)
    b = x1p.reshape((Bsz, Nsz, Ksz) if trans_b else (Bsz, Ksz, Nsz))

    res = _pallas_bmm(a, b, trans_b=trans_b)

    res = res.reshape([dims[c] for c in batch + m + n])
    current = batch + m + n
    res = jnp.transpose(res, [current.index(c) for c in out])
    return res


class Einsum:
    """JAX/Pallas port of cutensor.torch.Einsum (binary einsum forward)."""

    def __init__(self, equation):
        self.equation = equation
        self.reset_parameters()

    def reset_parameters(self):
        pass  # module has no parameters

    def __call__(self, input_0, input_1):
        return einsum2(self.equation, input_0, input_1)


if __name__ == "__main__":
    key = jax.random.PRNGKey(0)
    k0, k1, k2, k3, k4, k5 = jax.random.split(key, 6)

    # Attention-score style contraction (RHS contracts last dim -> trans_b path).
    eq1 = "bhqd,bhkd->bhqk"
    a1 = jax.random.normal(k0, (2, 4, 16, 32), dtype=jnp.float32)
    b1 = jax.random.normal(k1, (2, 4, 8, 32), dtype=jnp.float32)
    out1 = jax.block_until_ready(Einsum(eq1)(a1, b1))
    ref1 = jnp.einsum(eq1, a1, b1, precision=lax.Precision.HIGHEST)
    assert out1.shape == ref1.shape, (out1.shape, ref1.shape)
    assert jnp.allclose(out1, ref1, atol=2e-4, rtol=2e-4), float(
        jnp.max(jnp.abs(out1 - ref1)))

    # Unbatched-RHS projection (batch folds into M, standard (K,N) RHS path).
    eq2 = "bij,jk->bik"
    a2 = jax.random.normal(k2, (2, 16, 32), dtype=jnp.float32)
    b2 = jax.random.normal(k3, (32, 8), dtype=jnp.float32)
    out2 = jax.block_until_ready(Einsum(eq2)(a2, b2))
    ref2 = jnp.einsum(eq2, a2, b2, precision=lax.Precision.HIGHEST)
    assert out2.shape == ref2.shape, (out2.shape, ref2.shape)
    assert jnp.allclose(out2, ref2, atol=2e-4, rtol=2e-4), float(
        jnp.max(jnp.abs(out2 - ref2)))

    # Batched vector outer-ish contraction with output permutation.
    eq3 = "bij,bkj->bki"
    a3 = jax.random.normal(k4, (2, 8, 32), dtype=jnp.float32)
    b3 = jax.random.normal(k5, (2, 16, 32), dtype=jnp.float32)
    out3 = jax.block_until_ready(Einsum(eq3)(a3, b3))
    ref3 = jnp.einsum(eq3, a3, b3, precision=lax.Precision.HIGHEST)
    assert out3.shape == ref3.shape, (out3.shape, ref3.shape)
    assert jnp.allclose(out3, ref3, atol=2e-4, rtol=2e-4), float(
        jnp.max(jnp.abs(out3 - ref3)))

    print("KERNEL_OK")
</pallas_src>

<mosaic_0001>
module attributes {stable_mosaic.version = 11 : i64} {
  func.func @kernel(%arg0: i32, %arg1: i32, %arg2: i32, %arg3: memref<8x16x128xf32, #tpu.memory_space<vmem>>, %arg4: memref<8x128x128xf32, #tpu.memory_space<vmem>>, %arg5: memref<8x16x128xf32, #tpu.memory_space<vmem>>) attributes {dimension_semantics = [#tpu.dimension_semantics<parallel>, #tpu.dimension_semantics<parallel>, #tpu.dimension_semantics<parallel>], iteration_bounds = array<i64: 1, 1, 1>, scalar_prefetch = 0 : i64, scratch_operands = 0 : i64, tpu.core_type = #tpu.core_type<tc>, window_params = [{transform_indices = @transform_0, window_bounds = array<i64: 8, 16, 128>}, {transform_indices = @transform_1, window_bounds = array<i64: 8, 128, 128>}, {transform_indices = @transform_2, window_bounds = array<i64: 8, 16, 128>}]} {
    %c0 = arith.constant 0 : index
    %c0_0 = arith.constant 0 : index
    %c0_1 = arith.constant 0 : index
    %0 = vector.load %arg3[%c0, %c0_0, %c0_1] : memref<8x16x128xf32, #tpu.memory_space<vmem>>, vector<8x16x128xf32>
    %c0_2 = arith.constant 0 : index
    %c0_3 = arith.constant 0 : index
    %c0_4 = arith.constant 0 : index
    %1 = vector.load %arg4[%c0_2, %c0_3, %c0_4] : memref<8x128x128xf32, #tpu.memory_space<vmem>>, vector<8x128x128xf32>
    %cst = arith.constant dense<0.000000e+00> : vector<8x16x128xf32>
    %2 = tpu.matmul %0, %1, %cst {dimension_numbers = #tpu.dot_dimension_numbers<[2], [2], [1], [1], [0, 0, 0, 1, 1, 1], [0], [0]>} : vector<8x16x128xf32>, vector<8x128x128xf32>, vector<8x16x128xf32> -> vector<8x16x128xf32>
    %c0_5 = arith.constant 0 : index
    %c0_6 = arith.constant 0 : index
    %c0_7 = arith.constant 0 : index
    %3 = vector.load %arg5[%c0_5, %c0_6, %c0_7] : memref<8x16x128xf32, #tpu.memory_space<vmem>>, vector<8x16x128xf32>
    tpu.vector_store %arg5[%c0_5, %c0_6, %c0_7], %2 {strides = array<i32>} : memref<8x16x128xf32, #tpu.memory_space<vmem>>, vector<8x16x128xf32>,
    return
  }
  func.func @transform_0(%arg0: i32, %arg1: i32, %arg2: i32) -> (i32, i32, i32) {
    %c0_i32 = arith.constant 0 : i32
    %c0_i32_0 = arith.constant 0 : i32
    return %arg0, %arg1, %c0_i32 : i32, i32, i32
  }
  func.func @transform_1(%arg0: i32, %arg1: i32, %arg2: i32) -> (i32, i32, i32) {
    %c0_i32 = arith.constant 0 : i32
    %c0_i32_0 = arith.constant 0 : i32
    return %arg0, %arg2, %c0_i32 : i32, i32, i32
  }
  func.func @transform_2(%arg0: i32, %arg1: i32, %arg2: i32) -> (i32, i32, i32) {
    %c0_i32 = arith.constant 0 : i32
    return %arg0, %arg1, %arg2 : i32, i32, i32
  }
}

</mosaic_0001>

<llo_original>
// kernel: tpu_custom_call.1
$region0: #{tpu_custom_call.1}
  #allocation0 [shape = 'u32[]', space=smem, size = 0x4, offset = 0x4, fixed_abs, tag = 'smem constant byte address 0x4 - core index']
  #allocation1 [shape = 'u32[144,128]{1,0:T(1,128)}', space=vmem, size = 0x12000, scoped, tag = 'internal scratch']
  %s0 = inlined_call_operand.hbm [shape: f32[8,16,128], index: 0, kind: input, shape index: {}]
  %s1 = inlined_call_operand.hbm [shape: f32[8,128,128], index: 1, kind: input, shape index: {}]
  %s2 = inlined_call_operand.hbm [shape: f32[8,16,128], index: 2, kind: output, shape index: {}]
  %s3 = sld [smem:[#allocation0]]
  $region26: #{tpu_custom_call.1} parent=0
    _
  %s5 = ssub.s32 1, %s3
  %s6 = scalar_select 0, %s5, %s3
  $region1: #{tpu_custom_call.1} parent=0
    #allocation2 [shape = 'u8[65536]{0}', space=vmem, size = 0x10000, scoped, tag = 'input window, operand 0, single buffered']
    #allocation3 [shape = 's32[1]{0}', space=sflag, size = 0x4, scoped, tag = 'scoped memory for tpu_custom_call.1']
    #allocation4 [shape = 's32[1]{0}', space=sflag, size = 0x4, scoped, tag = 'scoped memory for tpu_custom_call.1']
    #allocation5 [shape = 'u8[524288]{0}', space=vmem, size = 0x80000, scoped, tag = 'input window, operand 1, single buffered']
    #allocation6 [shape = 's32[1]{0}', space=sflag, size = 0x4, scoped, tag = 'scoped memory for tpu_custom_call.1']
    #allocation7 [shape = 'u8[65536]{0}', space=vmem, size = 0x10000, scoped, tag = 'output window, operand 0, single buffered']
    %7 = vsyncpa [#allocation3], 0
    %8 = vsyncpa [#allocation6], 0
    %9 = vsyncpa [#allocation4], 0
    // Predicated region
    $region2: #{tpu_custom_call.1} parent=1 // pred_check
      _
    $region3: #{tpu_custom_call.1} parent=1 // pred_check_branch
      %11 = sbr.rel (0) target = $region5
    $region4: #{tpu_custom_call.1} parent=1 // pred_region
      %s13 = ssub.s32 2048, 2048
      %14 = vsyncadd [#allocation3], %s13
      %s15 = sshll.u32 [#allocation2], 4
      %s16 = int_to_ptr.vmem [resolvable:$true] %s15
      %21 = dma.hbm_to_vmem [thread:$0]  %s0, 2048, %s16, [#allocation3], 128, 128, 8
    $region5: #{tpu_custom_call.1} parent=1 // pred_fallthru
      _
    // Predicated region
    $region6: #{tpu_custom_call.1} parent=1 // pred_check
      _
    $region7: #{tpu_custom_call.1} parent=1 // pred_check_branch
      %23 = sbr.rel (0) target = $region9
    $region8: #{tpu_custom_call.1} parent=1 // pred_region
      %s25 = ssub.s32 16384, 16384
      %26 = vsyncadd [#allocation6], %s25
      %s27 = sshll.u32 [#allocation5], 4
      %s28 = int_to_ptr.vmem [resolvable:$true] %s27
      %33 = dma.hbm_to_vmem [thread:$0]  %s1, 16384, %s28, [#allocation6], 128, 128, 8
    $region9: #{tpu_custom_call.1} parent=1 // pred_fallthru
      _
    // Predicated region
    $region10: #{tpu_custom_call.1} parent=1 // pred_check
      _
    $region11: #{tpu_custom_call.1} parent=1 // pred_check_branch
      %35 = sbr.rel (0) target = $region13
    $region12: #{tpu_custom_call.1} parent=1 // pred_region
      %36 = dma.done [#allocation3], 2048
    $region13: #{tpu_custom_call.1} parent=1 // pred_fallthru
      _
    // Predicated region
    $region14: #{tpu_custom_call.1} parent=1 // pred_check
      _
    $region15: #{tpu_custom_call.1} parent=1 // pred_check_branch
      %38 = sbr.rel (0) target = $region17
    $region16: #{tpu_custom_call.1} parent=1 // pred_region
      %39 = dma.done [#allocation6], 16384
    $region17: #{tpu_custom_call.1} parent=1 // pred_fallthru
      _
    %v40 = vld [vmem:[#allocation2] sm:$0xff]
    %v41 = vld [vmem:[#allocation2 + $0x8] sm:$0xff]
    %v42 = vld [vmem:[#allocation2 + $0x10] sm:$0xff]
    %v43 = vld [vmem:[#allocation2 + $0x18] sm:$0xff]
    %v44 = vld [vmem:[#allocation2 + $0x20] sm:$0xff]
    %v45 = vld [vmem:[#allocation2 + $0x28] sm:$0xff]
    %v46 = vld [vmem:[#allocation2 + $0x30] sm:$0xff]
    %v47 = vld [vmem:[#allocation2 + $0x38] sm:$0xff]
    %v48 = vld [vmem:[#allocation2 + $0x40] sm:$0xff]
    %v49 = vld [vmem:[#allocation2 + $0x48] sm:$0xff]
    %v50 = vld [vmem:[#allocation2 + $0x50] sm:$0xff]
    %v51 = vld [vmem:[#allocation2 + $0x58] sm:$0xff]
    %v52 = vld [vmem:[#allocation2 + $0x60] sm:$0xff]
    %v53 = vld [vmem:[#allocation2 + $0x68] sm:$0xff]
    %v54 = vld [vmem:[#allocation2 + $0x70] sm:$0xff]
    %v55 = vld [vmem:[#allocation2 + $0x78] sm:$0xff]
    %v56 = vld [vmem:[#allocation5] sm:$0xff]
    %v57 = vld [vmem:[#allocation5 + $0x8] sm:$0xff]
    %v58 = vld [vmem:[#allocation5 + $0x10] sm:$0xff]
    %v59 = vld [vmem:[#allocation5 + $0x18] sm:$0xff]
    %v60 = vld [vmem:[#allocation5 + $0x20] sm:$0xff]
    %v61 = vld [vmem:[#allocation5 + $0x28] sm:$0xff]
    %v62 = vld [vmem:[#allocation5 + $0x30] sm:$0xff]
    %v63 = vld [vmem:[#allocation5 + $0x38] sm:$0xff]
    %v64 = vld [vmem:[#allocation5 + $0x40] sm:$0xff]
    %v65 = vld [vmem:[#allocation5 + $0x48] sm:$0xff]
    %v66 = vld [vmem:[#allocation5 + $0x50] sm:$0xff]
    %v67 = vld [vmem:[#allocation5 + $0x58] sm:$0xff]
    %v68 = vld [vmem:[#allocation5 + $0x60] sm:$0xff]
    %v69 = vld [vmem:[#allocation5 + $0x68] sm:$0xff]
    %v70 = vld [vmem:[#allocation5 + $0x70] sm:$0xff]
    %v71 = vld [vmem:[#allocation5 + $0x78] sm:$0xff]
    %v72 = vld [vmem:[#allocation5 + $0x80] sm:$0xff]
    %v73 = vld [vmem:[#allocation5 + $0x88] sm:$0xff]
    %v74 = vld [vmem:[#allocation5 + $0x90] sm:$0xff]
    %v75 = vld [vmem:[#allocation5 + $0x98] sm:$0xff]
    %v76 = vld [vmem:[#allocation5 + $0xa0] sm:$0xff]
    %v77 = vld [vmem:[#allocation5 + $0xa8] sm:$0xff]
    %v78 = vld [vmem:[#allocation5 + $0xb0] sm:$0xff]
    %v79 = vld [vmem:[#allocation5 + $0xb8] sm:$0xff]
    %v80 = vld [vmem:[#allocation5 + $0xc0] sm:$0xff]
    %v81 = vld [vmem:[#allocation5 + $0xc8] sm:$0xff]
    %v82 = vld [vmem:[#allocation5 + $0xd0] sm:$0xff]
    %v83 = vld [vmem:[#allocation5 + $0xd8] sm:$0xff]
    %v84 = vld [vmem:[#allocation5 + $0xe0] sm:$0xff]
    %v85 = vld [vmem:[#allocation5 + $0xe8] sm:$0xff]
    %v86 = vld [vmem:[#allocation5 + $0xf0] sm:$0xff]
    %v87 = vld [vmem:[#allocation5 + $0xf8] sm:$0xff]
    %v88 = vld [vmem:[#allocation5 + $0x100] sm:$0xff]
    %v89 = vld [vmem:[#allocation5 + $0x108] sm:$0xff]
    %v90 = vld [vmem:[#allocation5 + $0x110] sm:$0xff]
    %v91 = vld [vmem:[#allocation5 + $0x118] sm:$0xff]
    %v92 = vld [vmem:[#allocation5 + $0x120] sm:$0xff]
    %v93 = vld [vmem:[#allocation5 + $0x128] sm:$0xff]
    %v94 = vld [vmem:[#allocation5 + $0x130] sm:$0xff]
    %v95 = vld [vmem:[#allocation5 + $0x138] sm:$0xff]
    %v96 = vld [vmem:[#allocation5 + $0x140] sm:$0xff]
    %v97 = vld [vmem:[#allocation5 + $0x148] sm:$0xff]
    %v98 = vld [vmem:[#allocation5 + $0x150] sm:$0xff]
    %v99 = vld [vmem:[#allocation5 + $0x158] sm:$0xff]
    %v100 = vld [vmem:[#allocation5 + $0x160] sm:$0xff]
    %v101 = vld [vmem:[#allocation5 + $0x168] sm:$0xff]
    %v102 = vld [vmem:[#allocation5 + $0x170] sm:$0xff]
    %v103 = vld [vmem:[#allocation5 + $0x178] sm:$0xff]
    %v104 = vld [vmem:[#allocation5 + $0x180] sm:$0xff]
    %v105 = vld [vmem:[#allocation5 + $0x188] sm:$0xff]
    %v106 = vld [vmem:[#allocation5 + $0x190] sm:$0xff]
    %v107 = vld [vmem:[#allocation5 + $0x198] sm:$0xff]
    %v108 = vld [vmem:[#allocation5 + $0x1a0] sm:$0xff]
    %v109 = vld [vmem:[#allocation5 + $0x1a8] sm:$0xff]
    %v110 = vld [vmem:[#allocation5 + $0x1b0] sm:$0xff]
    %v111 = vld [vmem:[#allocation5 + $0x1b8] sm:$0xff]
    %v112 = vld [vmem:[#allocation5 + $0x1c0] sm:$0xff]
    %v113 = vld [vmem:[#allocation5 + $0x1c8] sm:$0xff]
    %v114 = vld [vmem:[#allocation5 + $0x1d0] sm:$0xff]
    %v115 = vld [vmem:[#allocation5 + $0x1d8] sm:$0xff]
    %v116 = vld [vmem:[#allocation5 + $0x1e0] sm:$0xff]
    %v117 = vld [vmem:[#allocation5 + $0x1e8] sm:$0xff]
    %v118 = vld [vmem:[#allocation5 + $0x1f0] sm:$0xff]
    %v119 = vld [vmem:[#allocation5 + $0x1f8] sm:$0xff]
    %v120 = vld [vmem:[#allocation5 + $0x200] sm:$0xff]
    %v121 = vld [vmem:[#allocation5 + $0x208] sm:$0xff]
    %v122 = vld [vmem:[#allocation5 + $0x210] sm:$0xff]
    %v123 = vld [vmem:[#allocation5 + $0x218] sm:$0xff]
    %v124 = vld [vmem:[#allocation5 + $0x220] sm:$0xff]
    %v125 = vld [vmem:[#allocation5 + $0x228] sm:$0xff]
    %v126 = vld [vmem:[#allocation5 + $0x230] sm:$0xff]
    %v127 = vld [vmem:[#allocation5 + $0x238] sm:$0xff]
    %v128 = vld [vmem:[#allocation5 + $0x240] sm:$0xff]
    %v129 = vld [vmem:[#allocation5 + $0x248] sm:$0xff]
    %v130 = vld [vmem:[#allocation5 + $0x250] sm:$0xff]
    %v131 = vld [vmem:[#allocation5 + $0x258] sm:$0xff]
    %v132 = vld [vmem:[#allocation5 + $0x260] sm:$0xff]
    %v133 = vld [vmem:[#allocation5 + $0x268] sm:$0xff]
    %v134 = vld [vmem:[#allocation5 + $0x270] sm:$0xff]
    %v135 = vld [vmem:[#allocation5 + $0x278] sm:$0xff]
    %v136 = vld [vmem:[#allocation5 + $0x280] sm:$0xff]
    %v137 = vld [vmem:[#allocation5 + $0x288] sm:$0xff]
    %v138 = vld [vmem:[#allocation5 + $0x290] sm:$0xff]
    %v139 = vld [vmem:[#allocation5 + $0x298] sm:$0xff]
    %v140 = vld [vmem:[#allocation5 + $0x2a0] sm:$0xff]
    %v141 = vld [vmem:[#allocation5 + $0x2a8] sm:$0xff]
    %v142 = vld [vmem:[#allocation5 + $0x2b0] sm:$0xff]
    %v143 = vld [vmem:[#allocation5 + $0x2b8] sm:$0xff]
    %v144 = vld [vmem:[#allocation5 + $0x2c0] sm:$0xff]
    %v145 = vld [vmem:[#allocation5 + $0x2c8] sm:$0xff]
    %v146 = vld [vmem:[#allocation5 + $0x2d0] sm:$0xff]
    %v147 = vld [vmem:[#allocation5 + $0x2d8] sm:$0xff]
    %v148 = vld [vmem:[#allocation5 + $0x2e0] sm:$0xff]
    %v149 = vld [vmem:[#allocation5 + $0x2e8] sm:$0xff]
    %v150 = vld [vmem:[#allocation5 + $0x2f0] sm:$0xff]
    %v151 = vld [vmem:[#allocation5 + $0x2f8] sm:$0xff]
    %v152 = vld [vmem:[#allocation5 + $0x300] sm:$0xff]
    %v153 = vld [vmem:[#allocation5 + $0x308] sm:$0xff]
    %v154 = vld [vmem:[#allocation5 + $0x310] sm:$0xff]
    %v155 = vld [vmem:[#allocation5 + $0x318] sm:$0xff]
    %v156 = vld [vmem:[#allocation5 + $0x320] sm:$0xff]
    %v157 = vld [vmem:[#allocation5 + $0x328] sm:$0xff]
    %v158 = vld [vmem:[#allocation5 + $0x330] sm:$0xff]
    %v159 = vld [vmem:[#allocation5 + $0x338] sm:$0xff]
    %v160 = vld [vmem:[#allocation5 + $0x340] sm:$0xff]
    %v161 = vld [vmem:[#allocation5 + $0x348] sm:$0xff]
    %v162 = vld [vmem:[#allocation5 + $0x350] sm:$0xff]
    %v163 = vld [vmem:[#allocation5 + $0x358] sm:$0xff]
    %v164 = vld [vmem:[#allocation5 + $0x360] sm:$0xff]
    %v165 = vld [vmem:[#allocation5 + $0x368] sm:$0xff]
    %v166 = vld [vmem:[#allocation5 + $0x370] sm:$0xff]
    %v167 = vld [vmem:[#allocation5 + $0x378] sm:$0xff]
    %v168 = vld [vmem:[#allocation5 + $0x380] sm:$0xff]
    %v169 = vld [vmem:[#allocation5 + $0x388] sm:$0xff]
    %v170 = vld [vmem:[#allocation5 + $0x390] sm:$0xff]
    %v171 = vld [vmem:[#allocation5 + $0x398] sm:$0xff]
    %v172 = vld [vmem:[#allocation5 + $0x3a0] sm:$0xff]
    %v173 = vld [vmem:[#allocation5 + $0x3a8] sm:$0xff]
    %v174 = vld [vmem:[#allocation5 + $0x3b0] sm:$0xff]
    %v175 = vld [vmem:[#allocation5 + $0x3b8] sm:$0xff]
    %v176 = vld [vmem:[#allocation5 + $0x3c0] sm:$0xff]
    %v177 = vld [vmem:[#allocation5 + $0x3c8] sm:$0xff]
    %v178 = vld [vmem:[#allocation5 + $0x3d0] sm:$0xff]
    %v179 = vld [vmem:[#allocation5 + $0x3d8] sm:$0xff]
    %v180 = vld [vmem:[#allocation5 + $0x3e0] sm:$0xff]
    %v181 = vld [vmem:[#allocation5 + $0x3e8] sm:$0xff]
    %v182 = vld [vmem:[#allocation5 + $0x3f0] sm:$0xff]
    %v183 = vld [vmem:[#allocation5 + $0x3f8] sm:$0xff]
    %184 = vmatprep.subr.mxu0 0.0
    %185 = vmatpush1.xpose.msra.mxu0 %v71
    %186 = vmatprep.subr.mxu0 0.0
    %187 = vmatpush1.xpose.msra.mxu0 %v70
    %188 = vmatprep.subr.mxu0 0.0
    %189 = vmatpush1.xpose.msra.mxu0 %v69
    %190 = vmatprep.subr.mxu0 0.0
    %191 = vmatpush1.xpose.msra.mxu0 %v68
    %192 = vmatprep.subr.mxu0 0.0
    %193 = vmatpush1.xpose.msra.mxu0 %v67
    %194 = vmatprep.subr.mxu0 0.0
    %195 = vmatpush1.xpose.msra.mxu0 %v66
    %196 = vmatprep.subr.mxu0 0.0
    %197 = vmatpush1.xpose.msra.mxu0 %v65
    %198 = vmatprep.subr.mxu0 0.0
    %199 = vmatpush1.xpose.msra.mxu0 %v64
    %200 = vmatprep.subr.mxu0 0.0
    %201 = vmatpush1.xpose.msra.mxu0 %v63
    %202 = vmatprep.subr.mxu0 0.0
    %203 = vmatpush1.xpose.msra.mxu0 %v62
    %204 = vmatprep.subr.mxu0 0.0
    %205 = vmatpush1.xpose.msra.mxu0 %v61
    %206 = vmatprep.subr.mxu0 0.0
    %207 = vmatpush1.xpose.msra.mxu0 %v60
    %208 = vmatprep.subr.mxu0 0.0
    %209 = vmatpush1.xpose.msra.mxu0 %v59
    %210 = vmatprep.subr.mxu0 0.0
    %211 = vmatpush1.xpose.msra.mxu0 %v58
    %212 = vmatprep.subr.mxu0 0.0
    %213 = vmatpush1.xpose.msra.mxu0 %v57
    %214 = vmatprep.subr.mxu0 0.0
    %215 = vmatpush1.xpose.msra.mxu0 %v56
    %216 = vmatprep.subr.mxu0 0.0
    %217 = vmatpush2.xpose.msra.mxu0 0.0
    %218 = vmatprep.subr.mxu0 0.0
    %219 = vmatpush2.xpose.msra.mxu0 0.0
    %220 = vmatprep.subr.mxu0 0.0
    %221 = vmatpush2.xpose.msra.mxu0 0.0
    %222 = vmatprep.subr.mxu0 0.0
    %223 = vmatpush2.xpose.msra.mxu0 0.0
    %224 = vmatprep.subr.mxu0 0.0
    %225 = vmatpush2.xpose.msra.mxu0 0.0
    %226 = vmatprep.subr.mxu0 0.0
    %227 = vmatpush2.xpose.msra.mxu0 0.0
    %228 = vmatprep.subr.mxu0 0.0
    %229 = vmatpush2.xpose.msra.mxu0 0.0
    %230 = vmatprep.subr.mxu0 0.0
    %231 = vmatpush2.xpose.msra.mxu0 0.0
    %232 = vmatprep.subr.mxu0 0.0
    %233 = vmatpush2.xpose.msra.mxu0 0.0
    %234 = vmatprep.subr.mxu0 0.0
    %235 = vmatpush2.xpose.msra.mxu0 0.0
    %236 = vmatprep.subr.mxu0 0.0
    %237 = vmatpush2.xpose.msra.mxu0 0.0
    %238 = vmatprep.subr.mxu0 0.0
    %239 = vmatpush2.xpose.msra.mxu0 0.0
    %240 = vmatprep.subr.mxu0 0.0
    %241 = vmatpush2.xpose.msra.mxu0 0.0
    %242 = vmatprep.subr.mxu0 0.0
    %243 = vmatpush2.xpose.msra.mxu0 0.0
    %244 = vmatprep.subr.mxu0 0.0
    %245 = vmatpush2.xpose.msra.mxu0 0.0
    %246 = vmatprep.subr.mxu0 0.0
    %247 = vmatpush2.xpose.msra.mxu0 0.0
    %248 = vmatprep.mubr.f32.mxu0 0.0
    %249 = vmatmul.mubr.f32.gmra.mxu0 %v40
    %v250 = vpop.f32.mrf.mxu0
    %v251 = vadd.f32 0.0, %v250
    %v252 = vpop.f32.mrf.mxu0
    %253 = vmatprep.mubr.f32.mxu0 0.0
    %254 = vmatmul.mubr.f32.gmra.mxu0 %v41
    %v255 = vpop.f32.mrf.mxu0
    %v256 = vadd.f32 0.0, %v255
    %v257 = vpop.f32.mrf.mxu0
    %258 = vdwg.mxu0
    %259 = vmatprep.subr.mxu0 0.0
    %260 = vmatpush1.xpose.msra.mxu0 %v87
    %261 = vmatprep.subr.mxu0 0.0
    %262 = vmatpush1.xpose.msra.mxu0 %v86
    %263 = vmatprep.subr.mxu0 0.0
    %264 = vmatpush1.xpose.msra.mxu0 %v85
    %265 = vmatprep.subr.mxu0 0.0
    %266 = vmatpush1.xpose.msra.mxu0 %v84
    %267 = vmatprep.subr.mxu0 0.0
    %268 = vmatpush1.xpose.msra.mxu0 %v83
    %269 = vmatprep.subr.mxu0 0.0
    %270 = vmatpush1.xpose.msra.mxu0 %v82
    %271 = vmatprep.subr.mxu0 0.0
    %272 = vmatpush1.xpose.msra.mxu0 %v81
    %273 = vmatprep.subr.mxu0 0.0
    %274 = vmatpush1.xpose.msra.mxu0 %v80
    %275 = vmatprep.subr.mxu0 0.0
    %276 = vmatpush1.xpose.msra.mxu0 %v79
    %277 = vmatprep.subr.mxu0 0.0
    %278 = vmatpush1.xpose.msra.mxu0 %v78
    %279 = vmatprep.subr.mxu0 0.0
    %280 = vmatpush1.xpose.msra.mxu0 %v77
    %281 = vmatprep.subr.mxu0 0.0
    %282 = vmatpush1.xpose.msra.mxu0 %v76
    %283 = vmatprep.subr.mxu0 0.0
    %284 = vmatpush1.xpose.msra.mxu0 %v75
    %285 = vmatprep.subr.mxu0 0.0
    %286 = vmatpush1.xpose.msra.mxu0 %v74
    %287 = vmatprep.subr.mxu0 0.0
    %288 = vmatpush1.xpose.msra.mxu0 %v73
    %289 = vmatprep.subr.mxu0 0.0
    %290 = vmatpush1.xpose.msra.mxu0 %v72
    %291 = vmatprep.subr.mxu0 0.0
    %292 = vmatpush2.xpose.msra.mxu0 0.0
    %293 = vmatprep.subr.mxu0 0.0
    %294 = vmatpush2.xpose.msra.mxu0 0.0
    %295 = vmatprep.subr.mxu0 0.0
    %296 = vmatpush2.xpose.msra.mxu0 0.0
    %297 = vmatprep.subr.mxu0 0.0
    %298 = vmatpush2.xpose.msra.mxu0 0.0
    %299 = vmatprep.subr.mxu0 0.0
    %300 = vmatpush2.xpose.msra.mxu0 0.0
    %301 = vmatprep.subr.mxu0 0.0
    %302 = vmatpush2.xpose.msra.mxu0 0.0
    %303 = vmatprep.subr.mxu0 0.0
    %304 = vmatpush2.xpose.msra.mxu0 0.0
    %305 = vmatprep.subr.mxu0 0.0
    %306 = vmatpush2.xpose.msra.mxu0 0.0
    %307 = vmatprep.subr.mxu0 0.0
    %308 = vmatpush2.xpose.msra.mxu0 0.0
    %309 = vmatprep.subr.mxu0 0.0
    %310 = vmatpush2.xpose.msra.mxu0 0.0
    %311 = vmatprep.subr.mxu0 0.0
    %312 = vmatpush2.xpose.msra.mxu0 0.0
    %313 = vmatprep.subr.mxu0 0.0
    %314 = vmatpush2.xpose.msra.mxu0 0.0
    %315 = vmatprep.subr.mxu0 0.0
    %316 = vmatpush2.xpose.msra.mxu0 0.0
    %317 = vmatprep.subr.mxu0 0.0
    %318 = vmatpush2.xpose.msra.mxu0 0.0
    %319 = vmatprep.subr.mxu0 0.0
    %320 = vmatpush2.xpose.msra.mxu0 0.0
    %321 = vmatprep.subr.mxu0 0.0
    %322 = vmatpush2.xpose.msra.mxu0 0.0
    %323 = vmatprep.mubr.f32.mxu0 0.0
    %324 = vmatmul.mubr.f32.gmra.mxu0 %v42
    %v325 = vpop.f32.mrf.mxu0
    %v326 = vadd.f32 0.0, %v325
    %v327 = vpop.f32.mrf.mxu0
    %328 = vmatprep.mubr.f32.mxu0 0.0
    %329 = vmatmul.mubr.f32.gmra.mxu0 %v43
    %v330 = vpop.f32.mrf.mxu0
    %v331 = vadd.f32 0.0, %v330
    %v332 = vpop.f32.mrf.mxu0
    %333 = vdwg.mxu0
    %334 = vmatprep.subr.mxu0 0.0
    %335 = vmatpush1.xpose.msra.mxu0 %v103
    %336 = vmatprep.subr.mxu0 0.0
    %337 = vmatpush1.xpose.msra.mxu0 %v102
    %338 = vmatprep.subr.mxu0 0.0
    %339 = vmatpush1.xpose.msra.mxu0 %v101
    %340 = vmatprep.subr.mxu0 0.0
    %341 = vmatpush1.xpose.msra.mxu0 %v100
    %342 = vmatprep.subr.mxu0 0.0
    %343 = vmatpush1.xpose.msra.mxu0 %v99
    %344 = vmatprep.subr.mxu0 0.0
    %345 = vmatpush1.xpose.msra.mxu0 %v98
    %346 = vmatprep.subr.mxu0 0.0
    %347 = vmatpush1.xpose.msra.mxu0 %v97
    %348 = vmatprep.subr.mxu0 0.0
    %349 = vmatpush1.xpose.msra.mxu0 %v96
    %350 = vmatprep.subr.mxu0 0.0
    %351 = vmatpush1.xpose.msra.mxu0 %v95
    %352 = vmatprep.subr.mxu0 0.0
    %353 = vmatpush1.xpose.msra.mxu0 %v94
    %354 = vmatprep.subr.mxu0 0.0
    %355 = vmatpush1.xpose.msra.mxu0 %v93
    %356 = vmatprep.subr.mxu0 0.0
    %357 = vmatpush1.xpose.msra.mxu0 %v92
    %358 = vmatprep.subr.mxu0 0.0
    %359 = vmatpush1.xpose.msra.mxu0 %v91
    %360 = vmatprep.subr.mxu0 0.0
    %361 = vmatpush1.xpose.msra.mxu0 %v90
    %362 = vmatprep.subr.mxu0 0.0
    %363 = vmatpush1.xpose.msra.mxu0 %v89
    %364 = vmatprep.subr.mxu0 0.0
    %365 = vmatpush1.xpose.msra.mxu0 %v88
    %366 = vmatprep.subr.mxu0 0.0
    %367 = vmatpush2.xpose.msra.mxu0 0.0
    %368 = vmatprep.subr.mxu0 0.0
    %369 = vmatpush2.xpose.msra.mxu0 0.0
    %370 = vmatprep.subr.mxu0 0.0
    %371 = vmatpush2.xpose.msra.mxu0 0.0
    %372 = vmatprep.subr.mxu0 0.0
    %373 = vmatpush2.xpose.msra.mxu0 0.0
    %374 = vmatprep.subr.mxu0 0.0
    %375 = vmatpush2.xpose.msra.mxu0 0.0
    %376 = vmatprep.subr.mxu0 0.0
    %377 = vmatpush2.xpose.msra.mxu0 0.0
    %378 = vmatprep.subr.mxu0 0.0
    %379 = vmatpush2.xpose.msra.mxu0 0.0
    %380 = vmatprep.subr.mxu0 0.0
    %381 = vmatpush2.xpose.msra.mxu0 0.0
    %382 = vmatprep.subr.mxu0 0.0
    %383 = vmatpush2.xpose.msra.mxu0 0.0
    %384 = vmatprep.subr.mxu0 0.0
    %385 = vmatpush2.xpose.msra.mxu0 0.0
    %386 = vmatprep.subr.mxu0 0.0
    %387 = vmatpush2.xpose.msra.mxu0 0.0
    %388 = vmatprep.subr.mxu0 0.0
    %389 = vmatpush2.xpose.msra.mxu0 0.0
    %390 = vmatprep.subr.mxu0 0.0
    %391 = vmatpush2.xpose.msra.mxu0 0.0
    %392 = vmatprep.subr.mxu0 0.0
    %393 = vmatpush2.xpose.msra.mxu0 0.0
    %394 = vmatprep.subr.mxu0 0.0
    %395 = vmatpush2.xpose.msra.mxu0 0.0
    %396 = vmatprep.subr.mxu0 0.0
    %397 = vmatpush2.xpose.msra.mxu0 0.0
    %398 = vmatprep.mubr.f32.mxu0 0.0
    %399 = vmatmul.mubr.f32.gmra.mxu0 %v44
    %v400 = vpop.f32.mrf.mxu0
    %v401 = vadd.f32 0.0, %v400
    %v402 = vpop.f32.mrf.mxu0
    %403 = vmatprep.mubr.f32.mxu0 0.0
    %404 = vmatmul.mubr.f32.gmra.mxu0 %v45
    %v405 = vpop.f32.mrf.mxu0
    %v406 = vadd.f32 0.0, %v405
    %v407 = vpop.f32.mrf.mxu0
    %408 = vdwg.mxu0
    %409 = vmatprep.subr.mxu0 0.0
    %410 = vmatpush1.xpose.msra.mxu0 %v119
    %411 = vmatprep.subr.mxu0 0.0
    %412 = vmatpush1.xpose.msra.mxu0 %v118
    %413 = vmatprep.subr.mxu0 0.0
    %414 = vmatpush1.xpose.msra.mxu0 %v117
    %415 = vmatprep.subr.mxu0 0.0
    %416 = vmatpush1.xpose.msra.mxu0 %v116
    %417 = vmatprep.subr.mxu0 0.0
    %418 = vmatpush1.xpose.msra.mxu0 %v115
    %419 = vmatprep.subr.mxu0 0.0
    %420 = vmatpush1.xpose.msra.mxu0 %v114
    %421 = vmatprep.subr.mxu0 0.0
    %422 = vmatpush1.xpose.msra.mxu0 %v113
    %423 = vmatprep.subr.mxu0 0.0
    %424 = vmatpush1.xpose.msra.mxu0 %v112
    %425 = vmatprep.subr.mxu0 0.0
    %426 = vmatpush1.xpose.msra.mxu0 %v111
    %427 = vmatprep.subr.mxu0 0.0
    %428 = vmatpush1.xpose.msra.mxu0 %v110
    %429 = vmatprep.subr.mxu0 0.0
    %430 = vmatpush1.xpose.msra.mxu0 %v109
    %431 = vmatprep.subr.mxu0 0.0
    %432 = vmatpush1.xpose.msra.mxu0 %v108
    %433 = vmatprep.subr.mxu0 0.0
    %434 = vmatpush1.xpose.msra.mxu0 %v107
    %435 = vmatprep.subr.mxu0 0.0
    %436 = vmatpush1.xpose.msra.mxu0 %v106
    %437 = vmatprep.subr.mxu0 0.0
    %438 = vmatpush1.xpose.msra.mxu0 %v105
    %439 = vmatprep.subr.mxu0 0.0
    %440 = vmatpush1.xpose.msra.mxu0 %v104
    %441 = vmatprep.subr.mxu0 0.0
    %442 = vmatpush2.xpose.msra.mxu0 0.0
    %443 = vmatprep.subr.mxu0 0.0
    %444 = vmatpush2.xpose.msra.mxu0 0.0
    %445 = vmatprep.subr.mxu0 0.0
    %446 = vmatpush2.xpose.msra.mxu0 0.0
    %447 = vmatprep.subr.mxu0 0.0
    %448 = vmatpush2.xpose.msra.mxu0 0.0
    %449 = vmatprep.subr.mxu0 0.0
    %450 = vmatpush2.xpose.msra.mxu0 0.0
    %451 = vmatprep.subr.mxu0 0.0
    %452 = vmatpush2.xpose.msra.mxu0 0.0
    %453 = vmatprep.subr.mxu0 0.0
    %454 = vmatpush2.xpose.msra.mxu0 0.0
    %455 = vmatprep.subr.mxu0 0.0
    %456 = vmatpush2.xpose.msra.mxu0 0.0
    %457 = vmatprep.subr.mxu0 0.0
    %458 = vmatpush2.xpose.msra.mxu0 0.0
    %459 = vmatprep.subr.mxu0 0.0
    %460 = vmatpush2.xpose.msra.mxu0 0.0
    %461 = vmatprep.subr.mxu0 0.0
    %462 = vmatpush2.xpose.msra.mxu0 0.0
    %463 = vmatprep.subr.mxu0 0.0
    %464 = vmatpush2.xpose.msra.mxu0 0.0
    %465 = vmatprep.subr.mxu0 0.0
    %466 = vmatpush2.xpose.msra.mxu0 0.0
    %467 = vmatprep.subr.mxu0 0.0
    %468 = vmatpush2.xpose.msra.mxu0 0.0
    %469 = vmatprep.subr.mxu0 0.0
    %470 = vmatpush2.xpose.msra.mxu0 0.0
    %471 = vmatprep.subr.mxu0 0.0
    %472 = vmatpush2.xpose.msra.mxu0 0.0
    %473 = vmatprep.mubr.f32.mxu0 0.0
    %474 = vmatmul.mubr.f32.gmra.mxu0 %v46
    %v475 = vpop.f32.mrf.mxu0
    %v476 = vadd.f32 0.0, %v475
    %v477 = vpop.f32.mrf.mxu0
    %478 = vmatprep.mubr.f32.mxu0 0.0
    %479 = vmatmul.mubr.f32.gmra.mxu0 %v47
    %v480 = vpop.f32.mrf.mxu0
    %v481 = vadd.f32 0.0, %v480
    %v482 = vpop.f32.mrf.mxu0
    %483 = vdwg.mxu0
    %484 = vmatprep.subr.mxu0 0.0
    %485 = vmatpush1.xpose.msra.mxu0 %v135
    %486 = vmatprep.subr.mxu0 0.0
    %487 = vmatpush1.xpose.msra.mxu0 %v134
    %488 = vmatprep.subr.mxu0 0.0
    %489 = vmatpush1.xpose.msra.mxu0 %v133
    %490 = vmatprep.subr.mxu0 0.0
    %491 = vmatpush1.xpose.msra.mxu0 %v132
    %492 = vmatprep.subr.mxu0 0.0
    %493 = vmatpush1.xpose.msra.mxu0 %v131
    %494 = vmatprep.subr.mxu0 0.0
    %495 = vmatpush1.xpose.msra.mxu0 %v130
    %496 = vmatprep.subr.mxu0 0.0
    %497 = vmatpush1.xpose.msra.mxu0 %v129
    %498 = vmatprep.subr.mxu0 0.0
    %499 = vmatpush1.xpose.msra.mxu0 %v128
    %500 = vmatprep.subr.mxu0 0.0
    %501 = vmatpush1.xpose.msra.mxu0 %v127
    %502 = vmatprep.subr.mxu0 0.0
    %503 = vmatpush1.xpose.msra.mxu0 %v126
    %504 = vmatprep.subr.mxu0 0.0
    %505 = vmatpush1.xpose.msra.mxu0 %v125
    %506 = vmatprep.subr.mxu0 0.0
    %507 = vmatpush1.xpose.msra.mxu0 %v124
    %508 = vmatprep.subr.mxu0 0.0
    %509 = vmatpush1.xpose.msra.mxu0 %v123
    %510 = vmatprep.subr.mxu0 0.0
    %511 = vmatpush1.xpose.msra.mxu0 %v122
    %512 = vmatprep.subr.mxu0 0.0
    %513 = vmatpush1.xpose.msra.mxu0 %v121
    %514 = vmatprep.subr.mxu0 0.0
    %515 = vmatpush1.xpose.msra.mxu0 %v120
    %516 = vmatprep.subr.mxu0 0.0
    %517 = vmatpush2.xpose.msra.mxu0 0.0
    %518 = vmatprep.subr.mxu0 0.0
    %519 = vmatpush2.xpose.msra.mxu0 0.0
    %520 = vmatprep.subr.mxu0 0.0
    %521 = vmatpush2.xpose.msra.mxu0 0.0
    %522 = vmatprep.subr.mxu0 0.0
    %523 = vmatpush2.xpose.msra.mxu0 0.0
    %524 = vmatprep.subr.mxu0 0.0
    %525 = vmatpush2.xpose.msra.mxu0 0.0
    %526 = vmatprep.subr.mxu0 0.0
    %527 = vmatpush2.xpose.msra.mxu0 0.0
    %528 = vmatprep.subr.mxu0 0.0
    %529 = vmatpush2.xpose.msra.mxu0 0.0
    %530 = vmatprep.subr.mxu0 0.0
    %531 = vmatpush2.xpose.msra.mxu0 0.0
    %532 = vmatprep.subr.mxu0 0.0
    %533 = vmatpush2.xpose.msra.mxu0 0.0
    %534 = vmatprep.subr.mxu0 0.0
    %535 = vmatpush2.xpose.msra.mxu0 0.0
    %536 = vmatprep.subr.mxu0 0.0
    %537 = vmatpush2.xpose.msra.mxu0 0.0
    %538 = vmatprep.subr.mxu0 0.0
    %539 = vmatpush2.xpose.msra.mxu0 0.0
    %540 = vmatprep.subr.mxu0 0.0
    %541 = vmatpush2.xpose.msra.mxu0 0.0
    %542 = vmatprep.subr.mxu0 0.0
    %543 = vmatpush2.xpose.msra.mxu0 0.0
    %544 = vmatprep.subr.mxu0 0.0
    %545 = vmatpush2.xpose.msra.mxu0 0.0
    %546 = vmatprep.subr.mxu0 0.0
    %547 = vmatpush2.xpose.msra.mxu0 0.0
    %548 = vmatprep.mubr.f32.mxu0 0.0
    %549 = vmatmul.mubr.f32.gmra.mxu0 %v48
    %v550 = vpop.f32.mrf.mxu0
    %v551 = vadd.f32 0.0, %v550
    %v552 = vpop.f32.mrf.mxu0
    %553 = vmatprep.mubr.f32.mxu0 0.0
    %554 = vmatmul.mubr.f32.gmra.mxu0 %v49
    %v555 = vpop.f32.mrf.mxu0
    %v556 = vadd.f32 0.0, %v555
    %v557 = vpop.f32.mrf.mxu0
    %558 = vdwg.mxu0
    %559 = vmatprep.subr.mxu0 0.0
    %560 = vmatpush1.xpose.msra.mxu0 %v151
    %561 = vmatprep.subr.mxu0 0.0
    %562 = vmatpush1.xpose.msra.mxu0 %v150
    %563 = vmatprep.subr.mxu0 0.0
    %564 = vmatpush1.xpose.msra.mxu0 %v149
    %565 = vmatprep.subr.mxu0 0.0
    %566 = vmatpush1.xpose.msra.mxu0 %v148
    %567 = vmatprep.subr.mxu0 0.0
    %568 = vmatpush1.xpose.msra.mxu0 %v147
    %569 = vmatprep.subr.mxu0 0.0
    %570 = vmatpush1.xpose.msra.mxu0 %v146
    %571 = vmatprep.subr.mxu0 0.0
    %572 = vmatpush1.xpose.msra.mxu0 %v145
    %573 = vmatprep.subr.mxu0 0.0
    %574 = vmatpush1.xpose.msra.mxu0 %v144
    %575 = vmatprep.subr.mxu0 0.0
    %576 = vmatpush1.xpose.msra.mxu0 %v143
    %577 = vmatprep.subr.mxu0 0.0
    %578 = vmatpush1.xpose.msra.mxu0 %v142
    %579 = vmatprep.subr.mxu0 0.0
    %580 = vmatpush1.xpose.msra.mxu0 %v141
    %581 = vmatprep.subr.mxu0 0.0
    %582 = vmatpush1.xpose.msra.mxu0 %v140
    %583 = vmatprep.subr.mxu0 0.0
    %584 = vmatpush1.xpose.msra.mxu0 %v139
    %585 = vmatprep.subr.mxu0 0.0
    %586 = vmatpush1.xpose.msra.mxu0 %v138
    %587 = vmatprep.subr.mxu0 0.0
    %588 = vmatpush1.xpose.msra.mxu0 %v137
    %589 = vmatprep.subr.mxu0 0.0
    %590 = vmatpush1.xpose.msra.mxu0 %v136
    %591 = vmatprep.subr.mxu0 0.0
    %592 = vmatpush2.xpose.msra.mxu0 0.0
    %593 = vmatprep.subr.mxu0 0.0
    %594 = vmatpush2.xpose.msra.mxu0 0.0
    %595 = vmatprep.subr.mxu0 0.0
    %596 = vmatpush2.xpose.msra.mxu0 0.0
    %597 = vmatprep.subr.mxu0 0.0
    %598 = vmatpush2.xpose.msra.mxu0 0.0
    %599 = vmatprep.subr.mxu0 0.0
    %600 = vmatpush2.xpose.msra.mxu0 0.0
    %601 = vmatprep.subr.mxu0 0.0
    %602 = vmatpush2.xpose.msra.mxu0 0.0
    %603 = vmatprep.subr.mxu0 0.0
    %604 = vmatpush2.xpose.msra.mxu0 0.0
    %605 = vmatprep.subr.mxu0 0.0
    %606 = vmatpush2.xpose.msra.mxu0 0.0
    %607 = vmatprep.subr.mxu0 0.0
    %608 = vmatpush2.xpose.msra.mxu0 0.0
    %609 = vmatprep.subr.mxu0 0.0
    %610 = vmatpush2.xpose.msra.mxu0 0.0
    %611 = vmatprep.subr.mxu0 0.0
    %612 = vmatpush2.xpose.msra.mxu0 0.0
    %613 = vmatprep.subr.mxu0 0.0
    %614 = vmatpush2.xpose.msra.mxu0 0.0
    %615 = vmatprep.subr.mxu0 0.0
    %616 = vmatpush2.xpose.msra.mxu0 0.0
    %617 = vmatprep.subr.mxu0 0.0
    %618 = vmatpush2.xpose.msra.mxu0 0.0
    %619 = vmatprep.subr.mxu0 0.0
    %620 = vmatpush2.xpose.msra.mxu0 0.0
    %621 = vmatprep.subr.mxu0 0.0
    %622 = vmatpush2.xpose.msra.mxu0 0.0
    %623 = vmatprep.mubr.f32.mxu0 0.0
    %624 = vmatmul.mubr.f32.gmra.mxu0 %v50
    %v625 = vpop.f32.mrf.mxu0
    %v626 = vadd.f32 0.0, %v625
    %v627 = vpop.f32.mrf.mxu0
    %628 = vmatprep.mubr.f32.mxu0 0.0
    %629 = vmatmul.mubr.f32.gmra.mxu0 %v51
    %v630 = vpop.f32.mrf.mxu0
    %v631 = vadd.f32 0.0, %v630
    %v632 = vpop.f32.mrf.mxu0
    %633 = vdwg.mxu0
    %634 = vmatprep.subr.mxu0 0.0
    %635 = vmatpush1.xpose.msra.mxu0 %v167
    %636 = vmatprep.subr.mxu0 0.0
    %637 = vmatpush1.xpose.msra.mxu0 %v166
    %638 = vmatprep.subr.mxu0 0.0
    %639 = vmatpush1.xpose.msra.mxu0 %v165
    %640 = vmatprep.subr.mxu0 0.0
    %641 = vmatpush1.xpose.msra.mxu0 %v164
    %642 = vmatprep.subr.mxu0 0.0
    %643 = vmatpush1.xpose.msra.mxu0 %v163
    %644 = vmatprep.subr.mxu0 0.0
    %645 = vmatpush1.xpose.msra.mxu0 %v162
    %646 = vmatprep.subr.mxu0 0.0
    %647 = vmatpush1.xpose.msra.mxu0 %v161
    %648 = vmatprep.subr.mxu0 0.0
    %649 = vmatpush1.xpose.msra.mxu0 %v160
    %650 = vmatprep.subr.mxu0 0.0
    %651 = vmatpush1.xpose.msra.mxu0 %v159
    %652 = vmatprep.subr.mxu0 0.0
    %653 = vmatpush1.xpose.msra.mxu0 %v158
    %654 = vmatprep.subr.mxu0 0.0
    %655 = vmatpush1.xpose.msra.mxu0 %v157
    %656 = vmatprep.subr.mxu0 0.0
    %657 = vmatpush1.xpose.msra.mxu0 %v156
    %658 = vmatprep.subr.mxu0 0.0
    %659 = vmatpush1.xpose.msra.mxu0 %v155
    %660 = vmatprep.subr.mxu0 0.0
    %661 = vmatpush1.xpose.msra.mxu0 %v154
    %662 = vmatprep.subr.mxu0 0.0
    %663 = vmatpush1.xpose.msra.mxu0 %v153
    %664 = vmatprep.subr.mxu0 0.0
    %665 = vmatpush1.xpose.msra.mxu0 %v152
    %666 = vmatprep.subr.mxu0 0.0
    %667 = vmatpush2.xpose.msra.mxu0 0.0
    %668 = vmatprep.subr.mxu0 0.0
    %669 = vmatpush2.xpose.msra.mxu0 0.0
    %670 = vmatprep.subr.mxu0 0.0
    %671 = vmatpush2.xpose.msra.mxu0 0.0
    %672 = vmatprep.subr.mxu0 0.0
    %673 = vmatpush2.xpose.msra.mxu0 0.0
    %674 = vmatprep.subr.mxu0 0.0
    %675 = vmatpush2.xpose.msra.mxu0 0.0
    %676 = vmatprep.subr.mxu0 0.0
    %677 = vmatpush2.xpose.msra.mxu0 0.0
    %678 = vmatprep.subr.mxu0 0.0
    %679 = vmatpush2.xpose.msra.mxu0 0.0
    %680 = vmatprep.subr.mxu0 0.0
    %681 = vmatpush2.xpose.msra.mxu0 0.0
    %682 = vmatprep.subr.mxu0 0.0
    %683 = vmatpush2.xpose.msra.mxu0 0.0
    %684 = vmatprep.subr.mxu0 0.0
    %685 = vmatpush2.xpose.msra.mxu0 0.0
    %686 = vmatprep.subr.mxu0 0.0
    %687 = vmatpush2.xpose.msra.mxu0 0.0
    %688 = vmatprep.subr.mxu0 0.0
    %689 = vmatpush2.xpose.msra.mxu0 0.0
    %690 = vmatprep.subr.mxu0 0.0
    %691 = vmatpush2.xpose.msra.mxu0 0.0
    %692 = vmatprep.subr.mxu0 0.0
    %693 = vmatpush2.xpose.msra.mxu0 0.0
    %694 = vmatprep.subr.mxu0 0.0
    %695 = vmatpush2.xpose.msra.mxu0 0.0
    %696 = vmatprep.subr.mxu0 0.0
    %697 = vmatpush2.xpose.msra.mxu0 0.0
    %698 = vmatprep.mubr.f32.mxu0 0.0
    %699 = vmatmul.mubr.f32.gmra.mxu0 %v52
    %v700 = vpop.f32.mrf.mxu0
    %v701 = vadd.f32 0.0, %v700
    %v702 = vpop.f32.mrf.mxu0
    %703 = vmatprep.mubr.f32.mxu0 0.0
    %704 = vmatmul.mubr.f32.gmra.mxu0 %v53
    %v705 = vpop.f32.mrf.mxu0
    %v706 = vadd.f32 0.0, %v705
    %v707 = vpop.f32.mrf.mxu0
    %708 = vdwg.mxu0
    %709 = vmatprep.subr.mxu0 0.0
    %710 = vmatpush1.xpose.msra.mxu0 %v183
    %711 = vmatprep.subr.mxu0 0.0
    %712 = vmatpush1.xpose.msra.mxu0 %v182
    %713 = vmatprep.subr.mxu0 0.0
    %714 = vmatpush1.xpose.msra.mxu0 %v181
    %715 = vmatprep.subr.mxu0 0.0
    %716 = vmatpush1.xpose.msra.mxu0 %v180
    %717 = vmatprep.subr.mxu0 0.0
    %718 = vmatpush1.xpose.msra.mxu0 %v179
    %719 = vmatprep.subr.mxu0 0.0
    %720 = vmatpush1.xpose.msra.mxu0 %v178
    %721 = vmatprep.subr.mxu0 0.0
    %722 = vmatpush1.xpose.msra.mxu0 %v177
    %723 = vmatprep.subr.mxu0 0.0
    %724 = vmatpush1.xpose.msra.mxu0 %v176
    %725 = vmatprep.subr.mxu0 0.0
    %726 = vmatpush1.xpose.msra.mxu0 %v175
    %727 = vmatprep.subr.mxu0 0.0
    %728 = vmatpush1.xpose.msra.mxu0 %v174
    %729 = vmatprep.subr.mxu0 0.0
    %730 = vmatpush1.xpose.msra.mxu0 %v173
    %731 = vmatprep.subr.mxu0 0.0
    %732 = vmatpush1.xpose.msra.mxu0 %v172
    %733 = vmatprep.subr.mxu0 0.0
    %734 = vmatpush1.xpose.msra.mxu0 %v171
    %735 = vmatprep.subr.mxu0 0.0
    %736 = vmatpush1.xpose.msra.mxu0 %v170
    %737 = vmatprep.subr.mxu0 0.0
    %738 = vmatpush1.xpose.msra.mxu0 %v169
    %739 = vmatprep.subr.mxu0 0.0
    %740 = vmatpush1.xpose.msra.mxu0 %v168
    %741 = vmatprep.subr.mxu0 0.0
    %742 = vmatpush2.xpose.msra.mxu0 0.0
    %743 = vmatprep.subr.mxu0 0.0
    %744 = vmatpush2.xpose.msra.mxu0 0.0
    %745 = vmatprep.subr.mxu0 0.0
    %746 = vmatpush2.xpose.msra.mxu0 0.0
    %747 = vmatprep.subr.mxu0 0.0
    %748 = vmatpush2.xpose.msra.mxu0 0.0
    %749 = vmatprep.subr.mxu0 0.0
    %750 = vmatpush2.xpose.msra.mxu0 0.0
    %751 = vmatprep.subr.mxu0 0.0
    %752 = vmatpush2.xpose.msra.mxu0 0.0
    %753 = vmatprep.subr.mxu0 0.0
    %754 = vmatpush2.xpose.msra.mxu0 0.0
    %755 = vmatprep.subr.mxu0 0.0
    %756 = vmatpush2.xpose.msra.mxu0 0.0
    %757 = vmatprep.subr.mxu0 0.0
    %758 = vmatpush2.xpose.msra.mxu0 0.0
    %759 = vmatprep.subr.mxu0 0.0
    %760 = vmatpush2.xpose.msra.mxu0 0.0
    %761 = vmatprep.subr.mxu0 0.0
    %762 = vmatpush2.xpose.msra.mxu0 0.0
    %763 = vmatprep.subr.mxu0 0.0
    %764 = vmatpush2.xpose.msra.mxu0 0.0
    %765 = vmatprep.subr.mxu0 0.0
    %766 = vmatpush2.xpose.msra.mxu0 0.0
    %767 = vmatprep.subr.mxu0 0.0
    %768 = vmatpush2.xpose.msra.mxu0 0.0
    %769 = vmatprep.subr.mxu0 0.0
    %770 = vmatpush2.xpose.msra.mxu0 0.0
    %771 = vmatprep.subr.mxu0 0.0
    %772 = vmatpush2.xpose.msra.mxu0 0.0
    %773 = vmatprep.mubr.f32.mxu0 0.0
    %774 = vmatmul.mubr.f32.gmra.mxu0 %v54
    %v775 = vpop.f32.mrf.mxu0
    %v776 = vadd.f32 0.0, %v775
    %v777 = vpop.f32.mrf.mxu0
    %778 = vmatprep.mubr.f32.mxu0 0.0
    %779 = vmatmul.mubr.f32.gmra.mxu0 %v55
    %v780 = vpop.f32.mrf.mxu0
    %v781 = vadd.f32 0.0, %v780
    %v782 = vpop.f32.mrf.mxu0
    %783 = vdwg.mxu0
    %784 = vst [vmem:[#allocation7] sm:$0xff] %v251
    %785 = vst [vmem:[#allocation7 + $0x8] sm:$0xff] %v256
    %786 = vst [vmem:[#allocation7 + $0x10] sm:$0xff] %v326
    %787 = vst [vmem:[#allocation7 + $0x18] sm:$0xff] %v331
    %788 = vst [vmem:[#allocation7 + $0x20] sm:$0xff] %v401
    %789 = vst [vmem:[#allocation7 + $0x28] sm:$0xff] %v406
    %790 = vst [vmem:[#allocation7 + $0x30] sm:$0xff] %v476
    %791 = vst [vmem:[#allocation7 + $0x38] sm:$0xff] %v481
    %792 = vst [vmem:[#allocation7 + $0x40] sm:$0xff] %v551
    %793 = vst [vmem:[#allocation7 + $0x48] sm:$0xff] %v556
    %794 = vst [vmem:[#allocation7 + $0x50] sm:$0xff] %v626
    %795 = vst [vmem:[#allocation7 + $0x58] sm:$0xff] %v631
    %796 = vst [vmem:[#allocation7 + $0x60] sm:$0xff] %v701
    %797 = vst [vmem:[#allocation7 + $0x68] sm:$0xff] %v706
    %798 = vst [vmem:[#allocation7 + $0x70] sm:$0xff] %v776
    %799 = vst [vmem:[#allocation7 + $0x78] sm:$0xff] %v781
    // Predicated region
    $region18: #{tpu_custom_call.1} parent=1 // pred_check
      _
    $region19: #{tpu_custom_call.1} parent=1 // pred_check_branch
      %801 = sbr.rel (0) target = $region21
    $region20: #{tpu_custom_call.1} parent=1 // pred_region
      %s803 = ssub.s32 2048, 2048
      %804 = vsyncadd [#allocation4], %s803
      %s805 = sshll.u32 [#allocation7], 4
      %s806 = int_to_ptr.vmem [resolvable:$true] %s805
      %811 = dma.vmem_to_hbm [thread:$0]  %s806, 2048, %s2, [#allocation4], 128, 128, 8
    $region21: #{tpu_custom_call.1} parent=1 // pred_fallthru
      _
    // Predicated region
    $region22: #{tpu_custom_call.1} parent=1 // pred_check
      _
    $region23: #{tpu_custom_call.1} parent=1 // pred_check_branch
      %813 = sbr.rel (0) target = $region25
    $region24: #{tpu_custom_call.1} parent=1 // pred_region
      %814 = dma.done [#allocation4], 2048
    $region25: #{tpu_custom_call.1} parent=1 // pred_fallthru
      _
    %815 = vsyncpa [#allocation3], 1
    %816 = vsyncpa [#allocation6], 1
    %817 = vsyncpa [#allocation4], 1

</llo_original>
